<compile_context>
chip_gen: v7x
topology: tpu7x:2x2x1
jax: 0.10.0
libtpu: 0.0.40
codegen_flags: <defaults>
</compile_context>

<pallas_src>
from typing import NamedTuple

import jax
import jax.numpy as jnp
from jax.experimental import pallas as pl
from jax.experimental.pallas import tpu as pltpu

_LANES = 128                 # TPU lane width
_GATE_PAD = _LANES           # each GRU gate padded to a full 128-lane block
_W3 = 3 * _GATE_PAD          # packed gate width [r | z | n] = 384 lanes
_OUT_LANES = 128             # lane-dense output slab width


class _Layout(NamedTuple):
    r_wi: int    # input->hidden gate weights  (C rows)
    r_wh: int    # hidden->hidden gate weights (H rows)
    r_w1: int    # fn1 weights                 (H rows)
    r_bi: int    # gi bias row: (b_ih+b_hh) for r,z blocks, b_ih for n block
    r_bhn: int   # b_hh_n row (lanes 0..H-1)
    r_b1: int    # fn1 bias row (lanes 0..H-1)
    r_rw: int    # reg weight row (lanes 0..H-1)
    r_rb: int    # reg bias, broadcast across lanes
    rows: int    # total slab rows (8-aligned)


def _slab_layout(in_channels: int, hidden_dim: int) -> _Layout:
    """Row layout of the packed parameter slab.  Every section starts on an
    8-row (sublane-tile) boundary so in-kernel slices are aligned."""
    def rup8(v):
        return (v + 7) // 8 * 8
    r_wi = 0
    r_wh = rup8(in_channels)
    r_w1 = r_wh + rup8(hidden_dim)
    r_vec = r_w1 + rup8(hidden_dim)
    return _Layout(r_wi, r_wh, r_w1,
                   r_vec, r_vec + 1, r_vec + 2, r_vec + 3, r_vec + 4,
                   rup8(r_vec + 5))


def prepare_head_params(params):
    """One-time packing of the torch-shaped parameters into a single
    (rows, 384) f32 slab.  Run at model init, NOT on the per-call path."""
    w_ih = jnp.asarray(params["weight_ih"], jnp.float32)   # (3H, C)
    w_hh = jnp.asarray(params["weight_hh"], jnp.float32)   # (3H, H)
    b_ih = jnp.asarray(params["bias_ih"], jnp.float32)     # (3H,)
    b_hh = jnp.asarray(params["bias_hh"], jnp.float32)     # (3H,)
    w1 = jnp.asarray(params["fn1_w"], jnp.float32)         # (H, H)
    b1 = jnp.asarray(params["fn1_b"], jnp.float32)         # (H,)
    rw = jnp.asarray(params["reg_w"], jnp.float32)         # (1, H)
    rb = jnp.asarray(params["reg_b"], jnp.float32)         # (1,)

    three_h, c_in = w_ih.shape
    hidden = w_hh.shape[1]
    assert three_h == 3 * hidden and hidden <= _GATE_PAD

    lay = _slab_layout(c_in, hidden)

    def gate_pack(w):            # (3H, K) -> (K, 384), each gate lane-padded to 128
        wt = w.T.reshape(-1, 3, hidden)
        wt = jnp.pad(wt, ((0, 0), (0, 0), (0, _GATE_PAD - hidden)))
        return wt.reshape(-1, _W3)

    def vec_pad(v):              # (H,) -> (384,), lanes 0..H-1 valid
        return jnp.pad(v, (0, _W3 - hidden))

    # Bias folding: r/z gates only ever see (gi + gh), so b_ih and b_hh are
    # pre-summed for those blocks; the n gate keeps b_ih with gi and b_hh with
    # gh (gated by r) so the torch.nn.GRUCell math stays exact.
    b_comb = b_ih + b_hh
    bi_vec = jnp.concatenate([b_comb[: 2 * hidden], b_ih[2 * hidden:]])
    bi_row = jnp.pad(bi_vec.reshape(3, hidden),
                     ((0, 0), (0, _GATE_PAD - hidden))).reshape(_W3)

    slab = jnp.zeros((lay.rows, _W3), jnp.float32)
    slab = slab.at[lay.r_wi: lay.r_wi + c_in, :].set(gate_pack(w_ih))
    slab = slab.at[lay.r_wh: lay.r_wh + hidden, :].set(gate_pack(w_hh))
    slab = slab.at[lay.r_w1: lay.r_w1 + hidden, :].set(
        jnp.pad(w1.T, ((0, 0), (0, _W3 - hidden))))
    slab = slab.at[lay.r_bi, :].set(bi_row)
    slab = slab.at[lay.r_bhn, :].set(vec_pad(b_hh[2 * hidden:]))
    slab = slab.at[lay.r_b1, :].set(vec_pad(b1))
    slab = slab.at[lay.r_rw, :].set(vec_pad(rw[0]))
    slab = slab.at[lay.r_rb, :].set(jnp.full((_W3,), rb[0], jnp.float32))
    return slab


def _head_math(x, h, p_ref, out_lanes):
    """GRUCell -> fn1 -> tanh -> reg on lane-padded gates.
    Returns (new hidden (B, H), lane-dense output (B, out_lanes))."""
    c_in = x.shape[1]
    hidden = h.shape[1]
    lay = _slab_layout(c_in, hidden)
    G = _GATE_PAD

    wi = p_ref[lay.r_wi: lay.r_wi + c_in, :]        # (C, 384)
    wh = p_ref[lay.r_wh: lay.r_wh + hidden, :]      # (H, 384)

    # Two fused MXU matmuls produce all six gate pre-activations at once.
    gi = (jnp.dot(x, wi, preferred_element_type=jnp.float32)
          + p_ref[lay.r_bi: lay.r_bi + 1, :])
    gh = jnp.dot(h, wh, preferred_element_type=jnp.float32)

    # torch.nn.GRUCell gate order r, z, n; each gate owns a 128-lane block so
    # these slices are whole-vreg selections (no lane shuffles).
    r = jax.nn.sigmoid(gi[:, 0:G] + gh[:, 0:G])
    z = jax.nn.sigmoid(gi[:, G:2 * G] + gh[:, G:2 * G])
    gh_n = gh[:, 2 * G:3 * G] + p_ref[lay.r_bhn: lay.r_bhn + 1, 0:G]
    n = jnp.tanh(gi[:, 2 * G:3 * G] + r * gh_n)

    hy = (1.0 - z[:, :hidden]) * n[:, :hidden] + z[:, :hidden] * h   # (B, H)

    w1 = p_ref[lay.r_w1: lay.r_w1 + hidden, 0:G]    # (H, 128)
    y1 = jnp.tanh(jnp.dot(hy, w1, preferred_element_type=jnp.float32)
                  + p_ref[lay.r_b1: lay.r_b1 + 1, 0:G])

    # reg (hidden_dim -> 1): VPU multiply + XLU lane reduction; broadcast over
    # lanes so the store is a dense vst and consumers can read any lane.
    rw_row = p_ref[lay.r_rw: lay.r_rw + 1, 0:G]
    s = jnp.sum(y1 * rw_row, axis=-1, keepdims=True)                 # (B, 1)
    y = s + p_ref[lay.r_rb: lay.r_rb + 1, 0:out_lanes]               # (B, out_lanes)
    return hy, y


def _head_kernel(x_ref, h_ref, p_ref, out_ref):
    _, y = _head_math(x_ref[...], h_ref[...], p_ref, out_ref.shape[-1])
    out_ref[...] = y


def _head_seq_kernel(x_ref, h0_ref, p_ref, y_ref, h_scr):
    @pl.when(pl.program_id(0) == 0)
    def _():
        h_scr[...] = h0_ref[...]
    hy, y = _head_math(x_ref[...], h_scr[...], p_ref, y_ref.shape[-1])
    h_scr[...] = hy          # hidden state carried in VMEM across grid steps
    y_ref[...] = y


@jax.jit
def head_forward(x, h, slab):
    """Single GRU step.  Returns a lane-dense (B, 128) slab; every lane holds y
    (fused consumers read any lane directly -- no per-call slice op)."""
    B, c_in = x.shape
    hidden = h.shape[1]
    vmem = pl.BlockSpec(memory_space=pltpu.MemorySpace.VMEM)
    flops = 2 * B * (c_in * _W3 + hidden * _W3 + hidden * _GATE_PAD + _GATE_PAD)
    bytes_accessed = 4 * (x.size + h.size + slab.size + B * _OUT_LANES)
    return pl.pallas_call(
        _head_kernel,
        out_shape=jax.ShapeDtypeStruct((B, _OUT_LANES), jnp.float32),
        in_specs=[vmem, vmem, vmem],
        out_specs=vmem,
        cost_estimate=pl.CostEstimate(flops=flops,
                                      transcendentals=4 * B * _GATE_PAD,
                                      bytes_accessed=bytes_accessed),
    )(x, h, slab)


@jax.jit
def head_forward_y(x, h, slab):
    """Torch-exact (B, 1) view of head_forward (matches Head.forward)."""
    return head_forward(x, h, slab)[:, :1]


@jax.jit
def head_forward_seq(xs, h0, slab):
    """Fused T-step driver: one launch, weights DMA'd once and kept resident,
    h carried in VMEM scratch.  xs: (T, B, C) -> (T, B, 128) lane-dense slab of
    per-step outputs (column 0 == the torch per-step y)."""
    T, B, c_in = xs.shape
    hidden = h0.shape[1]
    rows, w3 = slab.shape
    flops = 2 * T * B * (c_in * _W3 + hidden * _W3 + hidden * _GATE_PAD + _GATE_PAD)
    bytes_accessed = 4 * (xs.size + h0.size + slab.size + T * B * _OUT_LANES)
    return pl.pallas_call(
        _head_seq_kernel,
        out_shape=jax.ShapeDtypeStruct((T, B, _OUT_LANES), jnp.float32),
        grid_spec=pltpu.PrefetchScalarGridSpec(
            num_scalar_prefetch=0,
            grid=(T,),
            in_specs=[
                pl.BlockSpec((None, B, c_in), lambda t: (t, 0, 0)),   # per-step x
                pl.BlockSpec((B, hidden), lambda t: (0, 0)),          # h0, resident
                pl.BlockSpec((rows, w3), lambda t: (0, 0)),           # weights, resident
            ],
            out_specs=pl.BlockSpec((None, B, _OUT_LANES), lambda t: (t, 0, 0)),
            scratch_shapes=[pltpu.VMEM((B, hidden), jnp.float32)],    # h carry
        ),
        compiler_params=pltpu.CompilerParams(
            # Recurrent carry over time -> sequential ("arbitrary").  Add a
            # leading "parallel" batch-of-heads axis to use v7x's 2nd TC.
            dimension_semantics=("arbitrary",)),
        cost_estimate=pl.CostEstimate(flops=flops,
                                      transcendentals=4 * T * B * _GATE_PAD,
                                      bytes_accessed=bytes_accessed),
    )(xs, h0, slab)


def _reference_step(x, h, p):
    """Pure-JAX reference mirroring torch.nn.GRUCell + fn1 + tanh + reg."""
    gi = x @ p["weight_ih"].T + p["bias_ih"]
    gh = h @ p["weight_hh"].T + p["bias_hh"]
    hidden = h.shape[1]
    i_r, i_z, i_n = gi[:, :hidden], gi[:, hidden:2 * hidden], gi[:, 2 * hidden:]
    h_r, h_z, h_n = gh[:, :hidden], gh[:, hidden:2 * hidden], gh[:, 2 * hidden:]
    r = jax.nn.sigmoid(i_r + h_r)
    z = jax.nn.sigmoid(i_z + h_z)
    n = jnp.tanh(i_n + r * h_n)
    hy = (1.0 - z) * n + z * h
    y1 = jnp.tanh(hy @ p["fn1_w"].T + p["fn1_b"])
    return hy, y1 @ p["reg_w"].T + p["reg_b"]


if __name__ == "__main__":
    B, C_IN, H, T = 2, 4, 32, 8   # batch, in_channels, hidden_dim, seq len

    key = jax.random.PRNGKey(0)
    ks = jax.random.split(key, 11)
    scale = float(1.0 / jnp.sqrt(H))   # torch GRUCell/Linear init scale

    params = {
        "weight_ih": jax.random.uniform(ks[0], (3 * H, C_IN), jnp.float32, -scale, scale),
        "weight_hh": jax.random.uniform(ks[1], (3 * H, H), jnp.float32, -scale, scale),
        "bias_ih":   jax.random.uniform(ks[2], (3 * H,), jnp.float32, -scale, scale),
        "bias_hh":   jax.random.uniform(ks[3], (3 * H,), jnp.float32, -scale, scale),
        "fn1_w":     jax.random.uniform(ks[4], (H, H), jnp.float32, -scale, scale),
        "fn1_b":     jax.random.uniform(ks[5], (H,), jnp.float32, -scale, scale),
        "reg_w":     jax.random.uniform(ks[6], (1, H), jnp.float32, -scale, scale),
        "reg_b":     jax.random.uniform(ks[7], (1,), jnp.float32, -scale, scale),
    }

    x = jax.random.normal(ks[8], (B, C_IN), jnp.float32)
    h = jax.random.normal(ks[9], (B, H), jnp.float32)
    xs = jax.random.normal(ks[10], (T, B, C_IN), jnp.float32)

    # One-time parameter packing (model-init cost, not per-call).
    slab = jax.block_until_ready(prepare_head_params(params))

    # --- single step: exact Head.forward semantics ---
    y = jax.block_until_ready(head_forward_y(x, h, slab))
    _, y_ref = _reference_step(x, h, params)
    assert y.shape == (B, 1)
    assert jnp.allclose(y, y_ref, atol=1e-5, rtol=1e-5)

    # lane-dense variant: every lane of the slab carries y (no slice needed)
    y_slab = jax.block_until_ready(head_forward(x, h, slab))
    assert jnp.allclose(y_slab[:, :1], y_ref, atol=1e-5, rtol=1e-5)
    assert jnp.allclose(y_slab[:, 7:8], y_ref, atol=1e-5, rtol=1e-5)

    # --- fused T-step sequence (amortizes launch + weight DMA over T) ---
    ys = jax.block_until_ready(head_forward_seq(xs, h, slab))

    def scan_step(hc, xt):
        hn, yt = _reference_step(xt, hc, params)
        return hn, yt

    _, ys_ref = jax.lax.scan(scan_step, h, xs)
    assert ys.shape == (T, B, _OUT_LANES)
    assert jnp.allclose(ys[:, :, :1], ys_ref, atol=1e-4, rtol=1e-4)

    print("KERNEL_OK")
</pallas_src>

<mosaic_0001>
module attributes {stable_mosaic.version = 11 : i64} {
  func.func @_head_kernel(%arg0: memref<2x4xf32, #tpu.memory_space<vmem>>, %arg1: memref<2x32xf32, #tpu.memory_space<vmem>>, %arg2: memref<80x384xf32, #tpu.memory_space<vmem>>, %arg3: memref<2x128xf32, #tpu.memory_space<vmem>>) attributes {dimension_semantics = [], scalar_prefetch = 0 : i64, scratch_operands = 0 : i64, tpu.core_type = #tpu.core_type<tc>} {
    %c0 = arith.constant 0 : index
    %c0_0 = arith.constant 0 : index
    %0 = vector.load %arg0[%c0, %c0_0] : memref<2x4xf32, #tpu.memory_space<vmem>>, vector<2x4xf32>
    %c0_1 = arith.constant 0 : index
    %c0_2 = arith.constant 0 : index
    %1 = vector.load %arg1[%c0_1, %c0_2] : memref<2x32xf32, #tpu.memory_space<vmem>>, vector<2x32xf32>
    %c0_3 = arith.constant 0 : index
    %c0_4 = arith.constant 0 : index
    %2 = vector.load %arg2[%c0_3, %c0_4] : memref<80x384xf32, #tpu.memory_space<vmem>>, vector<4x384xf32>
    %c8 = arith.constant 8 : index
    %c0_5 = arith.constant 0 : index
    %3 = vector.load %arg2[%c8, %c0_5] : memref<80x384xf32, #tpu.memory_space<vmem>>, vector<32x384xf32>
    %cst = arith.constant dense<0.000000e+00> : vector<2x384xf32>
    %4 = tpu.matmul %0, %2, %cst {dimension_numbers = #tpu.dot_dimension_numbers<[1], [0], [0], [1], [0, 0, 1, 1], [], []>} : vector<2x4xf32>, vector<4x384xf32>, vector<2x384xf32> -> vector<2x384xf32>
    %c72 = arith.constant 72 : index
    %c0_6 = arith.constant 0 : index
    %5 = vector.load %arg2[%c72, %c0_6] : memref<80x384xf32, #tpu.memory_space<vmem>>, vector<1x384xf32>
    %6 = vector.broadcast %5 : vector<1x384xf32> to vector<2x384xf32>
    %7 = arith.addf %4, %6 : vector<2x384xf32>
    %cst_7 = arith.constant dense<0.000000e+00> : vector<2x384xf32>
    %8 = tpu.matmul %1, %3, %cst_7 {dimension_numbers = #tpu.dot_dimension_numbers<[1], [0], [0], [1], [0, 0, 1, 1], [], []>} : vector<2x32xf32>, vector<32x384xf32>, vector<2x384xf32> -> vector<2x384xf32>
    %9 = vector.extract_strided_slice %7 {offsets = [0, 0], sizes = [2, 128], strides = [1, 1]} : vector<2x384xf32> to vector<2x128xf32>
    %10 = vector.extract_strided_slice %8 {offsets = [0, 0], sizes = [2, 128], strides = [1, 1]} : vector<2x384xf32> to vector<2x128xf32>
    %11 = arith.addf %9, %10 : vector<2x128xf32>
    %12 = arith.negf %11 : vector<2x128xf32>
    %13 = math.exp %12 : vector<2x128xf32>
    %cst_8 = arith.constant 1.000000e+00 : f32
    %14 = vector.broadcast %cst_8 : f32 to vector<2x128xf32>
    %15 = arith.addf %14, %13 : vector<2x128xf32>
    %16 = arith.divf %14, %15 : vector<2x128xf32>
    %17 = vector.extract_strided_slice %7 {offsets = [0, 128], sizes = [2, 128], strides = [1, 1]} : vector<2x384xf32> to vector<2x128xf32>
    %18 = vector.extract_strided_slice %8 {offsets = [0, 128], sizes = [2, 128], strides = [1, 1]} : vector<2x384xf32> to vector<2x128xf32>
    %19 = arith.addf %17, %18 : vector<2x128xf32>
    %20 = arith.negf %19 : vector<2x128xf32>
    %21 = math.exp %20 : vector<2x128xf32>
    %cst_9 = arith.constant 1.000000e+00 : f32
    %22 = vector.broadcast %cst_9 : f32 to vector<2x128xf32>
    %23 = arith.addf %22, %21 : vector<2x128xf32>
    %24 = arith.divf %22, %23 : vector<2x128xf32>
    %25 = vector.extract_strided_slice %8 {offsets = [0, 256], sizes = [2, 128], strides = [1, 1]} : vector<2x384xf32> to vector<2x128xf32>
    %c73 = arith.constant 73 : index
    %c0_10 = arith.constant 0 : index
    %26 = vector.load %arg2[%c73, %c0_10] : memref<80x384xf32, #tpu.memory_space<vmem>>, vector<1x128xf32>
    %27 = vector.broadcast %26 : vector<1x128xf32> to vector<2x128xf32>
    %28 = arith.addf %25, %27 : vector<2x128xf32>
    %29 = vector.extract_strided_slice %7 {offsets = [0, 256], sizes = [2, 128], strides = [1, 1]} : vector<2x384xf32> to vector<2x128xf32>
    %30 = arith.mulf %16, %28 : vector<2x128xf32>
    %31 = arith.addf %29, %30 : vector<2x128xf32>
    %32 = math.tanh %31 : vector<2x128xf32>
    %33 = vector.extract_strided_slice %24 {offsets = [0, 0], sizes = [2, 32], strides = [1, 1]} : vector<2x128xf32> to vector<2x32xf32>
    %cst_11 = arith.constant 1.000000e+00 : f32
    %34 = vector.broadcast %cst_11 : f32 to vector<2x32xf32>
    %35 = arith.subf %34, %33 : vector<2x32xf32>
    %36 = vector.extract_strided_slice %32 {offsets = [0, 0], sizes = [2, 32], strides = [1, 1]} : vector<2x128xf32> to vector<2x32xf32>
    %37 = arith.mulf %35, %36 : vector<2x32xf32>
    %38 = vector.extract_strided_slice %24 {offsets = [0, 0], sizes = [2, 32], strides = [1, 1]} : vector<2x128xf32> to vector<2x32xf32>
    %39 = arith.mulf %38, %1 : vector<2x32xf32>
    %40 = arith.addf %37, %39 : vector<2x32xf32>
    %c40 = arith.constant 40 : index
    %c0_12 = arith.constant 0 : index
    %41 = vector.load %arg2[%c40, %c0_12] : memref<80x384xf32, #tpu.memory_space<vmem>>, vector<32x128xf32>
    %cst_13 = arith.constant dense<0.000000e+00> : vector<2x128xf32>
    %42 = tpu.matmul %40, %41, %cst_13 {dimension_numbers = #tpu.dot_dimension_numbers<[1], [0], [0], [1], [0, 0, 1, 1], [], []>} : vector<2x32xf32>, vector<32x128xf32>, vector<2x128xf32> -> vector<2x128xf32>
    %c74 = arith.constant 74 : index
    %c0_14 = arith.constant 0 : index
    %43 = vector.load %arg2[%c74, %c0_14] : memref<80x384xf32, #tpu.memory_space<vmem>>, vector<1x128xf32>
    %44 = vector.broadcast %43 : vector<1x128xf32> to vector<2x128xf32>
    %45 = arith.addf %42, %44 : vector<2x128xf32>
    %46 = math.tanh %45 : vector<2x128xf32>
    %c75 = arith.constant 75 : index
    %c0_15 = arith.constant 0 : index
    %47 = vector.load %arg2[%c75, %c0_15] : memref<80x384xf32, #tpu.memory_space<vmem>>, vector<1x128xf32>
    %48 = vector.broadcast %47 : vector<1x128xf32> to vector<2x128xf32>
    %49 = arith.mulf %46, %48 : vector<2x128xf32>
    %cst_16 = arith.constant dense<0.000000e+00> : vector<2xf32>
    %50 = vector.multi_reduction <add>, %49, %cst_16 [1] : vector<2x128xf32> to vector<2xf32>
    %51 = vector.shape_cast %50 : vector<2xf32> to vector<2x1xf32>
    %c76 = arith.constant 76 : index
    %c0_17 = arith.constant 0 : index
    %52 = vector.load %arg2[%c76, %c0_17] : memref<80x384xf32, #tpu.memory_space<vmem>>, vector<1x128xf32>
    %53 = vector.broadcast %51 : vector<2x1xf32> to vector<2x128xf32>
    %54 = vector.broadcast %52 : vector<1x128xf32> to vector<2x128xf32>
    %55 = arith.addf %53, %54 : vector<2x128xf32>
    %c0_18 = arith.constant 0 : index
    %c0_19 = arith.constant 0 : index
    %56 = vector.load %arg3[%c0_18, %c0_19] : memref<2x128xf32, #tpu.memory_space<vmem>>, vector<2x128xf32>
    tpu.vector_store %arg3[%c0_18, %c0_19], %55 {strides = array<i32>} : memref<2x128xf32, #tpu.memory_space<vmem>>, vector<2x128xf32>,
    return
  }
}

</mosaic_0001>

<llo_original>
// kernel: head_forward.1
$region0: #{head_forward.1}
  #allocation0 [shape = 'u32[]', space=smem, size = 0x4, offset = 0x4, fixed_abs, tag = 'smem constant byte address 0x4 - core index']
  #allocation1 [shape = 'u32[144,128]{1,0:T(1,128)}', space=vmem, size = 0x12000, scoped, tag = 'internal scratch']
  %s0 = inlined_call_operand.hbm [shape: f32[2,4], index: 0, kind: input, shape index: {}]
  %s1 = inlined_call_operand.vmem [shape: f32[2,32], index: 1, kind: input, shape index: {}]
  %s2 = inlined_call_operand.hbm [shape: f32[80,384], index: 2, kind: input, shape index: {}]
  %s3 = inlined_call_operand.hbm [shape: f32[2,128], index: 3, kind: output, shape index: {}]
  %s4 = sld [smem:[#allocation0]]
  $region30: #{head_forward.1} parent=0
    _
  %s6 = ssub.s32 1, %s4
  %s7 = scalar_select 0, %s6, %s4
  $region1: #{head_forward.1} parent=0
    #allocation2 [shape = 'u8[1024]{0}', space=vmem, size = 0x400, scoped, tag = 'input window, operand 0, single buffered']
    #allocation3 [shape = 's32[1]{0}', space=sflag, size = 0x4, scoped, tag = 'scoped memory for head_forward.1']
    #allocation4 [shape = 's32[1]{0}', space=sflag, size = 0x4, scoped, tag = 'scoped memory for head_forward.1']
    #allocation5 [shape = 'u8[122880]{0}', space=vmem, size = 0x1e000, scoped, tag = 'input window, operand 2, single buffered']
    #allocation6 [shape = 's32[1]{0}', space=sflag, size = 0x4, scoped, tag = 'scoped memory for head_forward.1']
    #allocation7 [shape = 'u8[1024]{0}', space=vmem, size = 0x400, scoped, tag = 'output window, operand 0, single buffered']
    %8 = vsyncpa [#allocation3], 0
    %9 = vsyncpa [#allocation6], 0
    %10 = vsyncpa [#allocation4], 0
    // Predicated region
    $region2: #{head_forward.1} parent=1 // pred_check
      _
    $region3: #{head_forward.1} parent=1 // pred_check_branch
      %12 = sbr.rel (0) target = $region5
    $region4: #{head_forward.1} parent=1 // pred_region
      %s14 = ssub.s32 32, 32
      %15 = vsyncadd [#allocation3], %s14
      %s17 = sshll.u32 [#allocation2], 4
      %s18 = int_to_ptr.vmem [resolvable:$true] %s17
      %20 = dma.hbm_to_vmem [thread:$0]  %s0, 32, %s18, [#allocation3]
    $region5: #{head_forward.1} parent=1 // pred_fallthru
      _
    // Predicated region
    $region6: #{head_forward.1} parent=1 // pred_check
      _
    $region7: #{head_forward.1} parent=1 // pred_check_branch
      %22 = sbr.rel (0) target = $region9
    $region8: #{head_forward.1} parent=1 // pred_region
      _
    $region9: #{head_forward.1} parent=1 // pred_fallthru
      _
    // Predicated region
    $region10: #{head_forward.1} parent=1 // pred_check
      _
    $region11: #{head_forward.1} parent=1 // pred_check_branch
      %24 = sbr.rel (0) target = $region13
    $region12: #{head_forward.1} parent=1 // pred_region
      %s26 = ssub.s32 3840, 3840
      %27 = vsyncadd [#allocation6], %s26
      %s28 = sshll.u32 [#allocation5], 4
      %s29 = int_to_ptr.vmem [resolvable:$true] %s28
      %34 = dma.hbm_to_vmem [thread:$0]  %s2, 3840, %s29, [#allocation6], 384, 384, 24
    $region13: #{head_forward.1} parent=1 // pred_fallthru
      _
    // Predicated region
    $region14: #{head_forward.1} parent=1 // pred_check
      _
    $region15: #{head_forward.1} parent=1 // pred_check_branch
      %36 = sbr.rel (0) target = $region17
    $region16: #{head_forward.1} parent=1 // pred_region
      %37 = dma.done [#allocation3], 32
    $region17: #{head_forward.1} parent=1 // pred_fallthru
      _
    // Predicated region
    $region18: #{head_forward.1} parent=1 // pred_check
      _
    $region19: #{head_forward.1} parent=1 // pred_check_branch
      %39 = sbr.rel (0) target = $region21
    $region20: #{head_forward.1} parent=1 // pred_region
      %40 = dma.done [#allocation6], 3840
    $region21: #{head_forward.1} parent=1 // pred_fallthru
      _
    %v41 = vld [vmem:[#allocation2] sm:$0x3]
    %v42 = vld [vmem:[%s1] sm:$0x3]
    %v43 = vld [vmem:[#allocation5] sm:$0xf]
    %v44 = vld [vmem:[#allocation5 + $0x8] sm:$0xf]
    %v45 = vld [vmem:[#allocation5 + $0x10] sm:$0xf]
    %v46 = vld [vmem:[#allocation5 + $0x18] sm:$0xff]
    %v47 = vld [vmem:[#allocation5 + $0x20] sm:$0xff]
    %v48 = vld [vmem:[#allocation5 + $0x28] sm:$0xff]
    %v49 = vld [vmem:[#allocation5 + $0x30] sm:$0xff]
    %v50 = vld [vmem:[#allocation5 + $0x38] sm:$0xff]
    %v51 = vld [vmem:[#allocation5 + $0x40] sm:$0xff]
    %v52 = vld [vmem:[#allocation5 + $0x48] sm:$0xff]
    %v53 = vld [vmem:[#allocation5 + $0x50] sm:$0xff]
    %v54 = vld [vmem:[#allocation5 + $0x58] sm:$0xff]
    %v55 = vld [vmem:[#allocation5 + $0x60] sm:$0xff]
    %v56 = vld [vmem:[#allocation5 + $0x68] sm:$0xff]
    %v57 = vld [vmem:[#allocation5 + $0x70] sm:$0xff]
    %s58 = scalar_lea.vmem [#allocation5], 216
    %v59 = vld [vmem:[%s58] ss:$8 sm:$0x7]
    %v61 = vlaneseq
    %v62 = vshrl.u32 %v61, 7
    %v63 = vsub.s32 0, %v62
    %v64 = vrot.slane %v59, %v63
    %v65 = vlaneseq
    %v66 = vshrl.u32 %v65, 7
    %v67 = vsub.s32 1, %v66
    %v68 = vrot.slane %v59, %v67
    %v69 = vlaneseq
    %v70 = vshrl.u32 %v69, 7
    %v71 = vsub.s32 2, %v70
    %v72 = vrot.slane %v59, %v71
    %vm76 = vcmask 31744
    %v78 = vsel %vm76, %v41, 0
    %vm80 = vcmask 1043456
    %v82 = vsel %vm80, %v43, 0
    %v85 = vsel %vm80, %v44, 0
    %v88 = vsel %vm80, %v45, 0
    %90 = vmatprep.subr.mxu0 %v85
    %91 = vmatpush1.msra.mxu0 %v82
    %92 = vmatprep.subr.mxu0 0.0
    %93 = vmatpush1.msra.mxu0 0.0
    %94 = vmatprep.subr.mxu0 0.0
    %95 = vmatpush1.msra.mxu0 0.0
    %96 = vmatprep.subr.mxu0 0.0
    %97 = vmatpush1.msra.mxu0 0.0
    %98 = vmatprep.subr.mxu0 0.0
    %99 = vmatpush1.msra.mxu0 0.0
    %100 = vmatprep.subr.mxu0 0.0
    %101 = vmatpush1.msra.mxu0 0.0
    %102 = vmatprep.subr.mxu0 0.0
    %103 = vmatpush1.msra.mxu0 0.0
    %104 = vmatprep.subr.mxu0 0.0
    %105 = vmatpush1.msra.mxu0 0.0
    %106 = vmatprep.subr.mxu0 0.0
    %107 = vmatpush1.msra.mxu0 0.0
    %108 = vmatprep.subr.mxu0 0.0
    %109 = vmatpush1.msra.mxu0 0.0
    %110 = vmatprep.subr.mxu0 0.0
    %111 = vmatpush1.msra.mxu0 0.0
    %112 = vmatprep.subr.mxu0 0.0
    %113 = vmatpush1.msra.mxu0 0.0
    %114 = vmatprep.subr.mxu0 0.0
    %115 = vmatpush1.msra.mxu0 0.0
    %116 = vmatprep.subr.mxu0 0.0
    %117 = vmatpush1.msra.mxu0 0.0
    %118 = vmatprep.subr.mxu0 0.0
    %119 = vmatpush1.msra.mxu0 0.0
    %120 = vmatprep.subr.mxu0 0.0
    %121 = vmatpush1.msra.mxu0 0.0
    %122 = vmatprep.subr.mxu0 0.0
    %123 = vmatpush1.msra.mxu0 0.0
    %124 = vmatprep.subr.mxu0 0.0
    %125 = vmatpush1.msra.mxu0 0.0
    %126 = vmatprep.subr.mxu0 0.0
    %127 = vmatpush1.msra.mxu0 0.0
    %128 = vmatprep.subr.mxu0 0.0
    %129 = vmatpush1.msra.mxu0 0.0
    %130 = vmatprep.subr.mxu0 0.0
    %131 = vmatpush1.msra.mxu0 0.0
    %132 = vmatprep.subr.mxu0 0.0
    %133 = vmatpush1.msra.mxu0 0.0
    %134 = vmatprep.subr.mxu0 0.0
    %135 = vmatpush1.msra.mxu0 0.0
    %136 = vmatprep.subr.mxu0 0.0
    %137 = vmatpush1.msra.mxu0 0.0
    %138 = vmatprep.subr.mxu0 0.0
    %139 = vmatpush1.msra.mxu0 0.0
    %140 = vmatprep.subr.mxu0 0.0
    %141 = vmatpush1.msra.mxu0 0.0
    %142 = vmatprep.subr.mxu0 0.0
    %143 = vmatpush1.msra.mxu0 0.0
    %144 = vmatprep.subr.mxu0 0.0
    %145 = vmatpush1.msra.mxu0 0.0
    %146 = vmatprep.subr.mxu0 0.0
    %147 = vmatpush1.msra.mxu0 0.0
    %148 = vmatprep.subr.mxu0 0.0
    %149 = vmatpush1.msra.mxu0 0.0
    %150 = vmatprep.subr.mxu0 0.0
    %151 = vmatpush1.msra.mxu0 0.0
    %152 = vmatprep.subr.mxu0 0.0
    %153 = vmatpush1.msra.mxu0 0.0
    %154 = vmatprep.mubr.f32.mxu0 0.0
    %155 = vmatmul.mubr.f32.gmra.mrb[0].mxu0 %v78
    %v156 = vpop.f32.mrb[0].mxu0
    %v157 = vadd.f32 %v64, %v156
    %v158 = vpop.f32.mrb[0].mxu0
    %v159 = vadd.f32 %v68, %v158
    %160 = vdwg.mxu0
    %161 = vmatprep.subr.mxu0 0.0
    %162 = vmatpush1.msra.mxu0 %v88
    %163 = vmatprep.subr.mxu0 0.0
    %164 = vmatpush1.msra.mxu0 0.0
    %165 = vmatprep.subr.mxu0 0.0
    %166 = vmatpush1.msra.mxu0 0.0
    %167 = vmatprep.subr.mxu0 0.0
    %168 = vmatpush1.msra.mxu0 0.0
    %169 = vmatprep.subr.mxu0 0.0
    %170 = vmatpush1.msra.mxu0 0.0
    %171 = vmatprep.subr.mxu0 0.0
    %172 = vmatpush1.msra.mxu0 0.0
    %173 = vmatprep.subr.mxu0 0.0
    %174 = vmatpush1.msra.mxu0 0.0
    %175 = vmatprep.subr.mxu0 0.0
    %176 = vmatpush1.msra.mxu0 0.0
    %177 = vmatprep.subr.mxu0 0.0
    %178 = vmatpush1.msra.mxu0 0.0
    %179 = vmatprep.subr.mxu0 0.0
    %180 = vmatpush1.msra.mxu0 0.0
    %181 = vmatprep.subr.mxu0 0.0
    %182 = vmatpush1.msra.mxu0 0.0
    %183 = vmatprep.subr.mxu0 0.0
    %184 = vmatpush1.msra.mxu0 0.0
    %185 = vmatprep.subr.mxu0 0.0
    %186 = vmatpush1.msra.mxu0 0.0
    %187 = vmatprep.subr.mxu0 0.0
    %188 = vmatpush1.msra.mxu0 0.0
    %189 = vmatprep.subr.mxu0 0.0
    %190 = vmatpush1.msra.mxu0 0.0
    %191 = vmatprep.subr.mxu0 0.0
    %192 = vmatpush1.msra.mxu0 0.0
    %193 = vmatprep.subr.mxu0 0.0
    %194 = vmatpush1.msra.mxu0 0.0
    %195 = vmatprep.subr.mxu0 0.0
    %196 = vmatpush1.msra.mxu0 0.0
    %197 = vmatprep.subr.mxu0 0.0
    %198 = vmatpush1.msra.mxu0 0.0
    %199 = vmatprep.subr.mxu0 0.0
    %200 = vmatpush1.msra.mxu0 0.0
    %201 = vmatprep.subr.mxu0 0.0
    %202 = vmatpush1.msra.mxu0 0.0
    %203 = vmatprep.subr.mxu0 0.0
    %204 = vmatpush1.msra.mxu0 0.0
    %205 = vmatprep.subr.mxu0 0.0
    %206 = vmatpush1.msra.mxu0 0.0
    %207 = vmatprep.subr.mxu0 0.0
    %208 = vmatpush1.msra.mxu0 0.0
    %209 = vmatprep.subr.mxu0 0.0
    %210 = vmatpush1.msra.mxu0 0.0
    %211 = vmatprep.subr.mxu0 0.0
    %212 = vmatpush1.msra.mxu0 0.0
    %213 = vmatprep.subr.mxu0 0.0
    %214 = vmatpush1.msra.mxu0 0.0
    %215 = vmatprep.subr.mxu0 0.0
    %216 = vmatpush1.msra.mxu0 0.0
    %217 = vmatprep.subr.mxu0 0.0
    %218 = vmatpush1.msra.mxu0 0.0
    %219 = vmatprep.subr.mxu0 0.0
    %220 = vmatpush1.msra.mxu0 0.0
    %221 = vmatprep.subr.mxu0 0.0
    %222 = vmatpush1.msra.mxu0 0.0
    %223 = vmatprep.subr.mxu0 0.0
    %224 = vmatpush1.msra.mxu0 0.0
    %225 = vmatprep.mubr.f32.mxu0 0.0
    %226 = vmatmul.mubr.f32.gmra.mrb[0].mxu0 %v78
    %v227 = vpop.f32.mrb[0].mxu0
    %v228 = vadd.f32 %v72, %v227
    %v229 = vpop.f32.mrb[0].mxu0
    %230 = vdwg.mxu0
    %vm231 = vcmask 261120
    %v233 = vsel %vm231, %v42, 0
    %235 = vmatprep.subr.mxu0 %v47
    %236 = vmatpush1.msra.mxu0 %v46
    %237 = vmatprep.subr.mxu0 %v50
    %238 = vmatpush1.msra.mxu0 %v49
    %239 = vmatprep.subr.mxu0 %v53
    %240 = vmatpush1.msra.mxu0 %v52
    %241 = vmatprep.subr.mxu0 %v56
    %242 = vmatpush1.msra.mxu0 %v55
    %243 = vmatprep.subr.mxu0 0.0
    %244 = vmatpush1.msra.mxu0 0.0
    %245 = vmatprep.subr.mxu0 0.0
    %246 = vmatpush1.msra.mxu0 0.0
    %247 = vmatprep.subr.mxu0 0.0
    %248 = vmatpush1.msra.mxu0 0.0
    %249 = vmatprep.subr.mxu0 0.0
    %250 = vmatpush1.msra.mxu0 0.0
    %251 = vmatprep.subr.mxu0 0.0
    %252 = vmatpush1.msra.mxu0 0.0
    %253 = vmatprep.subr.mxu0 0.0
    %254 = vmatpush1.msra.mxu0 0.0
    %255 = vmatprep.subr.mxu0 0.0
    %256 = vmatpush1.msra.mxu0 0.0
    %257 = vmatprep.subr.mxu0 0.0
    %258 = vmatpush1.msra.mxu0 0.0
    %259 = vmatprep.subr.mxu0 0.0
    %260 = vmatpush1.msra.mxu0 0.0
    %261 = vmatprep.subr.mxu0 0.0
    %262 = vmatpush1.msra.mxu0 0.0
    %263 = vmatprep.subr.mxu0 0.0
    %264 = vmatpush1.msra.mxu0 0.0
    %265 = vmatprep.subr.mxu0 0.0
    %266 = vmatpush1.msra.mxu0 0.0
    %267 = vmatprep.subr.mxu0 0.0
    %268 = vmatpush1.msra.mxu0 0.0
    %269 = vmatprep.subr.mxu0 0.0
    %270 = vmatpush1.msra.mxu0 0.0
    %271 = vmatprep.subr.mxu0 0.0
    %272 = vmatpush1.msra.mxu0 0.0
    %273 = vmatprep.subr.mxu0 0.0
    %274 = vmatpush1.msra.mxu0 0.0
    %275 = vmatprep.subr.mxu0 0.0
    %276 = vmatpush1.msra.mxu0 0.0
    %277 = vmatprep.subr.mxu0 0.0
    %278 = vmatpush1.msra.mxu0 0.0
    %279 = vmatprep.subr.mxu0 0.0
    %280 = vmatpush1.msra.mxu0 0.0
    %281 = vmatprep.subr.mxu0 0.0
    %282 = vmatpush1.msra.mxu0 0.0
    %283 = vmatprep.subr.mxu0 0.0
    %284 = vmatpush1.msra.mxu0 0.0
    %285 = vmatprep.subr.mxu0 0.0
    %286 = vmatpush1.msra.mxu0 0.0
    %287 = vmatprep.subr.mxu0 0.0
    %288 = vmatpush1.msra.mxu0 0.0
    %289 = vmatprep.subr.mxu0 0.0
    %290 = vmatpush1.msra.mxu0 0.0
    %291 = vmatprep.subr.mxu0 0.0
    %292 = vmatpush1.msra.mxu0 0.0
    %293 = vmatprep.subr.mxu0 0.0
    %294 = vmatpush1.msra.mxu0 0.0
    %295 = vmatprep.subr.mxu0 0.0
    %296 = vmatpush1.msra.mxu0 0.0
    %297 = vmatprep.subr.mxu0 0.0
    %298 = vmatpush1.msra.mxu0 0.0
    %299 = vmatprep.mubr.f32.mxu0 0.0
    %300 = vmatmul.mubr.f32.gmra.mrb[0].mxu0 %v233
    %v301 = vpop.f32.mrb[0].mxu0
    %v302 = vadd.f32 0.0, %v301
    %v303 = vpop.f32.mrb[0].mxu0
    %v304 = vadd.f32 0.0, %v303
    %305 = vdwg.mxu0
    %306 = vmatprep.subr.mxu0 0.0
    %307 = vmatpush1.msra.mxu0 %v48
    %308 = vmatprep.subr.mxu0 0.0
    %309 = vmatpush1.msra.mxu0 %v51
    %310 = vmatprep.subr.mxu0 0.0
    %311 = vmatpush1.msra.mxu0 %v54
    %312 = vmatprep.subr.mxu0 0.0
    %313 = vmatpush1.msra.mxu0 %v57
    %314 = vmatprep.subr.mxu0 0.0
    %315 = vmatpush1.msra.mxu0 0.0
    %316 = vmatprep.subr.mxu0 0.0
    %317 = vmatpush1.msra.mxu0 0.0
    %318 = vmatprep.subr.mxu0 0.0
    %319 = vmatpush1.msra.mxu0 0.0
    %320 = vmatprep.subr.mxu0 0.0
    %321 = vmatpush1.msra.mxu0 0.0
    %322 = vmatprep.subr.mxu0 0.0
    %323 = vmatpush1.msra.mxu0 0.0
    %324 = vmatprep.subr.mxu0 0.0
    %325 = vmatpush1.msra.mxu0 0.0
    %326 = vmatprep.subr.mxu0 0.0
    %327 = vmatpush1.msra.mxu0 0.0
    %328 = vmatprep.subr.mxu0 0.0
    %329 = vmatpush1.msra.mxu0 0.0
    %330 = vmatprep.subr.mxu0 0.0
    %331 = vmatpush1.msra.mxu0 0.0
    %332 = vmatprep.subr.mxu0 0.0
    %333 = vmatpush1.msra.mxu0 0.0
    %334 = vmatprep.subr.mxu0 0.0
    %335 = vmatpush1.msra.mxu0 0.0
    %336 = vmatprep.subr.mxu0 0.0
    %337 = vmatpush1.msra.mxu0 0.0
    %338 = vmatprep.subr.mxu0 0.0
    %339 = vmatpush1.msra.mxu0 0.0
    %340 = vmatprep.subr.mxu0 0.0
    %341 = vmatpush1.msra.mxu0 0.0
    %342 = vmatprep.subr.mxu0 0.0
    %343 = vmatpush1.msra.mxu0 0.0
    %344 = vmatprep.subr.mxu0 0.0
    %345 = vmatpush1.msra.mxu0 0.0
    %346 = vmatprep.subr.mxu0 0.0
    %347 = vmatpush1.msra.mxu0 0.0
    %348 = vmatprep.subr.mxu0 0.0
    %349 = vmatpush1.msra.mxu0 0.0
    %350 = vmatprep.subr.mxu0 0.0
    %351 = vmatpush1.msra.mxu0 0.0
    %352 = vmatprep.subr.mxu0 0.0
    %353 = vmatpush1.msra.mxu0 0.0
    %354 = vmatprep.subr.mxu0 0.0
    %355 = vmatpush1.msra.mxu0 0.0
    %356 = vmatprep.subr.mxu0 0.0
    %357 = vmatpush1.msra.mxu0 0.0
    %358 = vmatprep.subr.mxu0 0.0
    %359 = vmatpush1.msra.mxu0 0.0
    %360 = vmatprep.subr.mxu0 0.0
    %361 = vmatpush1.msra.mxu0 0.0
    %362 = vmatprep.subr.mxu0 0.0
    %363 = vmatpush1.msra.mxu0 0.0
    %364 = vmatprep.subr.mxu0 0.0
    %365 = vmatpush1.msra.mxu0 0.0
    %366 = vmatprep.subr.mxu0 0.0
    %367 = vmatpush1.msra.mxu0 0.0
    %368 = vmatprep.subr.mxu0 0.0
    %369 = vmatpush1.msra.mxu0 0.0
    %370 = vmatprep.mubr.f32.mxu0 0.0
    %371 = vmatmul.mubr.f32.gmra.mrb[0].mxu0 %v233
    %v372 = vpop.f32.mrb[0].mxu0
    %v373 = vadd.f32 0.0, %v372
    %v374 = vpop.f32.mrb[0].mxu0
    %375 = vdwg.mxu0
    %v376 = vadd.f32 %v157, %v302
    %v377 = vxor.u32 %v376, 2147483648
    %v378 = vmul.f32 %v377, 1.442695
    %v379 = vpow.pop %v378
    %v380 = vadd.f32 %v379, 1.0
    %v381 = vrcp.pop %v380
    %v382 = vmul.f32 1.0, %v381
    %v383 = vadd.f32 %v159, %v304
    %v384 = vxor.u32 %v383, 2147483648
    %v385 = vmul.f32 %v384, 1.442695
    %v386 = vpow.pop %v385
    %v387 = vadd.f32 %v386, 1.0
    %v388 = vrcp.pop %v387
    %v389 = vmul.f32 1.0, %v388
    %v390 = vld [vmem:[#allocation5 + $0xd9] ss:$0 sm:$0xff]
    %v391 = vadd.f32 %v373, %v390
    %v392 = vmul.f32 %v382, %v391
    %v393 = vadd.f32 %v228, %v392
    %v394 = vtanh.pop %v393
    %v395 = vsub.f32 1.0, %v389
    %v396 = vmul.f32 %v395, %v394
    %v397 = vmul.f32 %v389, %v42
    %v398 = vadd.f32 %v396, %v397
    %v399 = vld [vmem:[#allocation5 + $0x78] sm:$0xff]
    %v400 = vld [vmem:[#allocation5 + $0x90] sm:$0xff]
    %v401 = vld [vmem:[#allocation5 + $0xa8] sm:$0xff]
    %v402 = vld [vmem:[#allocation5 + $0xc0] sm:$0xff]
    %v403 = vld [vmem:[#allocation5 + $0xda] ss:$0 sm:$0xff]
    %v405 = vsel %vm231, %v398, 0
    %407 = vmatprep.subr.mxu0 0.0
    %408 = vmatpush1.msra.mxu0 %v399
    %409 = vmatprep.subr.mxu0 0.0
    %410 = vmatpush1.msra.mxu0 %v400
    %411 = vmatprep.subr.mxu0 0.0
    %412 = vmatpush1.msra.mxu0 %v401
    %413 = vmatprep.subr.mxu0 0.0
    %414 = vmatpush1.msra.mxu0 %v402
    %415 = vmatprep.subr.mxu0 0.0
    %416 = vmatpush1.msra.mxu0 0.0
    %417 = vmatprep.subr.mxu0 0.0
    %418 = vmatpush1.msra.mxu0 0.0
    %419 = vmatprep.subr.mxu0 0.0
    %420 = vmatpush1.msra.mxu0 0.0
    %421 = vmatprep.subr.mxu0 0.0
    %422 = vmatpush1.msra.mxu0 0.0
    %423 = vmatprep.subr.mxu0 0.0
    %424 = vmatpush1.msra.mxu0 0.0
    %425 = vmatprep.subr.mxu0 0.0
    %426 = vmatpush1.msra.mxu0 0.0
    %427 = vmatprep.subr.mxu0 0.0
    %428 = vmatpush1.msra.mxu0 0.0
    %429 = vmatprep.subr.mxu0 0.0
    %430 = vmatpush1.msra.mxu0 0.0
    %431 = vmatprep.subr.mxu0 0.0
    %432 = vmatpush1.msra.mxu0 0.0
    %433 = vmatprep.subr.mxu0 0.0
    %434 = vmatpush1.msra.mxu0 0.0
    %435 = vmatprep.subr.mxu0 0.0
    %436 = vmatpush1.msra.mxu0 0.0
    %437 = vmatprep.subr.mxu0 0.0
    %438 = vmatpush1.msra.mxu0 0.0
    %439 = vmatprep.subr.mxu0 0.0
    %440 = vmatpush1.msra.mxu0 0.0
    %441 = vmatprep.subr.mxu0 0.0
    %442 = vmatpush1.msra.mxu0 0.0
    %443 = vmatprep.subr.mxu0 0.0
    %444 = vmatpush1.msra.mxu0 0.0
    %445 = vmatprep.subr.mxu0 0.0
    %446 = vmatpush1.msra.mxu0 0.0
    %447 = vmatprep.subr.mxu0 0.0
    %448 = vmatpush1.msra.mxu0 0.0
    %449 = vmatprep.subr.mxu0 0.0
    %450 = vmatpush1.msra.mxu0 0.0
    %451 = vmatprep.subr.mxu0 0.0
    %452 = vmatpush1.msra.mxu0 0.0
    %453 = vmatprep.subr.mxu0 0.0
    %454 = vmatpush1.msra.mxu0 0.0
    %455 = vmatprep.subr.mxu0 0.0
    %456 = vmatpush1.msra.mxu0 0.0
    %457 = vmatprep.subr.mxu0 0.0
    %458 = vmatpush1.msra.mxu0 0.0
    %459 = vmatprep.subr.mxu0 0.0
    %460 = vmatpush1.msra.mxu0 0.0
    %461 = vmatprep.subr.mxu0 0.0
    %462 = vmatpush1.msra.mxu0 0.0
    %463 = vmatprep.subr.mxu0 0.0
    %464 = vmatpush1.msra.mxu0 0.0
    %465 = vmatprep.subr.mxu0 0.0
    %466 = vmatpush1.msra.mxu0 0.0
    %467 = vmatprep.subr.mxu0 0.0
    %468 = vmatpush1.msra.mxu0 0.0
    %469 = vmatprep.subr.mxu0 0.0
    %470 = vmatpush1.msra.mxu0 0.0
    %471 = vmatprep.mubr.f32.mxu0 0.0
    %472 = vmatmul.mubr.f32.gmra.mrb[0].mxu0 %v405
    %v473 = vpop.f32.mrb[0].mxu0
    %v474 = vadd.f32 %v403, %v473
    %v475 = vpop.f32.mrb[0].mxu0
    %476 = vdwg.mxu0
    %v477 = vtanh.pop %v474
    %v478 = vld [vmem:[#allocation5 + $0xdb] ss:$0 sm:$0xff]
    %v479 = vmul.f32 %v477, %v478
    %vm480 = vcmask 1041408
    %v481 = vsel %vm480, %v479, 0.0
    %482 = vadd.xlane.f32.xlu0 %v481
    %v483 = vpop.xlane.xlu0 %482
    %v484 = vld [vmem:[#allocation5 + $0xdc] ss:$0 sm:$0xff]
    %v485 = vadd.f32 %v483, %v484
    %486 = vst [vmem:[#allocation7] sm:$0x3] %v485
    // Predicated region
    $region22: #{head_forward.1} parent=1 // pred_check
      _
    $region23: #{head_forward.1} parent=1 // pred_check_branch
      %488 = sbr.rel (0) target = $region25
    $region24: #{head_forward.1} parent=1 // pred_region
      %s490 = ssub.s32 32, 32
      %491 = vsyncadd [#allocation4], %s490
      %s493 = sshll.u32 [#allocation7], 4
      %s494 = int_to_ptr.vmem [resolvable:$true] %s493
      %496 = dma.vmem_to_hbm [thread:$0]  %s494, 32, %s3, [#allocation4]
    $region25: #{head_forward.1} parent=1 // pred_fallthru
      _
    // Predicated region
    $region26: #{head_forward.1} parent=1 // pred_check
      _
    $region27: #{head_forward.1} parent=1 // pred_check_branch
      %498 = sbr.rel (0) target = $region29
    $region28: #{head_forward.1} parent=1 // pred_region
      %499 = dma.done [#allocation4], 32
    $region29: #{head_forward.1} parent=1 // pred_fallthru
      _
    %500 = vsyncpa [#allocation3], 1
    %501 = vsyncpa [#allocation6], 1
    %502 = vsyncpa [#allocation4], 1

</llo_original>
